<compile_context>
chip_gen: v6e
topology: v6e:2x2x1
jax: 0.10.0
libtpu: 0.0.40
codegen_flags: <defaults>
</compile_context>

<pallas_src>
import functools
import math

import jax
import jax.numpy as jnp
from jax.experimental import pallas as pl
from jax.experimental.pallas import tpu as pltpu


def _round_up(x, m):
    return ((x + m - 1) // m) * m


def bert_intermediate_kernel(x_ref, w_ref, b_ref, o_ref, *, compute_dtype):
    """Fused dense + exact (erf) gelu on one (tm, tn) output tile.

    x_ref: [tm, H]   activation tile
    w_ref: [H, tn]   weight tile (stored [H, I], so kernel does x @ W)
    b_ref: [1, tn]   bias tile
    o_ref: [tm, tn]  output tile
    """
    x = x_ref[...].astype(compute_dtype)
    w = w_ref[...].astype(compute_dtype)

    # MXU matmul with f32 accumulation; bias added in f32.
    y = jnp.dot(x, w, preferred_element_type=jnp.float32) + b_ref[...].astype(jnp.float32)

    # gelu(y) = y * 0.5 * (1 + erf(y / sqrt(2)))   (exact, matches torch.erf form)
    g = y * 0.5 * (1.0 + jax.lax.erf(y * (1.0 / math.sqrt(2.0))))
    o_ref[...] = g.astype(o_ref.dtype)


def bert_intermediate(hidden_states, weight, bias, *,
                      tm=256, tn=512,
                      compute_dtype=jnp.bfloat16,
                      out_dtype=None):
    """hidden_states: [B, S, H]; weight: [H, I]; bias: [I] -> [B, S, I]."""
    B, S, H = hidden_states.shape
    I = weight.shape[1]
    M = B * S
    out_dtype = out_dtype or hidden_states.dtype

    # Align tiles to TPU layout: tm multiple of 8 (f32 sublanes), tn multiple of 128 (lanes).
    tm = min(_round_up(tm, 8), _round_up(M, 8))
    tn = min(_round_up(tn, 128), _round_up(I, 128))

    Mp = _round_up(M, tm)
    Ip = _round_up(I, tn)

    x2d = hidden_states.reshape(M, H)
    if Mp != M:
        x2d = jnp.pad(x2d, ((0, Mp - M), (0, 0)))
    w2d = weight
    b2d = bias.reshape(1, I)
    if Ip != I:
        w2d = jnp.pad(w2d, ((0, 0), (0, Ip - I)))
        b2d = jnp.pad(b2d, ((0, 0), (0, Ip - I)))

    grid = (Mp // tm, Ip // tn)

    itemsize = jnp.dtype(jnp.float32).itemsize
    bytes_accessed = (Mp * H + H * Ip + Ip) * itemsize + Mp * Ip * jnp.dtype(out_dtype).itemsize
    cost = pl.CostEstimate(
        flops=2 * Mp * H * Ip,
        transcendentals=Mp * Ip,
        bytes_accessed=bytes_accessed,
    )

    out2d = pl.pallas_call(
        functools.partial(bert_intermediate_kernel, compute_dtype=compute_dtype),
        out_shape=jax.ShapeDtypeStruct((Mp, Ip), out_dtype),
        grid_spec=pl.GridSpec(
            grid=grid,
            in_specs=[
                pl.BlockSpec((tm, H), lambda i, j: (i, 0)),
                pl.BlockSpec((H, tn), lambda i, j: (0, j)),
                pl.BlockSpec((1, tn), lambda i, j: (0, j)),
            ],
            out_specs=pl.BlockSpec((tm, tn), lambda i, j: (i, j)),
        ),
        compiler_params=pltpu.CompilerParams(
            dimension_semantics=("parallel", "parallel"),
            vmem_limit_bytes=64 << 20,
        ),
        cost_estimate=cost,
    )(x2d, w2d, b2d)

    if Mp != M or Ip != I:
        out2d = out2d[:M, :I]
    return out2d.reshape(B, S, I)


def gelu_ref(x):
    return x * 0.5 * (1.0 + jax.lax.erf(x / math.sqrt(2.0)))


if __name__ == "__main__":
    # Small BERT-like config: hidden_size=32, intermediate_size=128.
    batch, seq, hidden, intermediate = 2, 8, 32, 128

    key = jax.random.PRNGKey(0)
    k_x, k_w, k_b = jax.random.split(key, 3)

    hidden_states = jax.random.normal(k_x, (batch, seq, hidden), dtype=jnp.float32)
    # Deterministic parameter init (synthetic, not a checkpoint load).
    weight = jax.random.normal(k_w, (hidden, intermediate), dtype=jnp.float32) * 0.02
    bias = jax.random.normal(k_b, (intermediate,), dtype=jnp.float32) * 0.02

    # Pure-JAX reference.
    ref = gelu_ref(jnp.einsum("bsh,hi->bsi", hidden_states, weight) + bias)

    # 1) Default path: bf16 MXU operands, f32 accumulation (loosened tolerance).
    out_bf16 = bert_intermediate(hidden_states, weight, bias,
                                 compute_dtype=jnp.bfloat16)
    out_bf16 = jax.block_until_ready(out_bf16)
    assert out_bf16.shape == (batch, seq, intermediate)
    assert jnp.allclose(out_bf16, ref, atol=1e-2, rtol=1e-2), \
        "bf16-compute path mismatch vs reference"

    # 2) Exact parity path: f32 operands, matches torch erf-GELU semantics tightly.
    out_f32 = bert_intermediate(hidden_states, weight, bias,
                                compute_dtype=jnp.float32)
    out_f32 = jax.block_until_ready(out_f32)
    assert jnp.allclose(out_f32, ref, atol=1e-5, rtol=1e-5), \
        "f32-compute path mismatch vs reference"

    print("KERNEL_OK")
</pallas_src>

<mosaic_0001>
module attributes {stable_mosaic.version = 11 : i64} {
  func.func @bert_intermediate_kernel(%arg0: i32, %arg1: i32, %arg2: memref<16x32xf32, #tpu.memory_space<vmem>>, %arg3: memref<32x128xf32, #tpu.memory_space<vmem>>, %arg4: memref<1x128xf32, #tpu.memory_space<vmem>>, %arg5: memref<16x128xf32, #tpu.memory_space<vmem>>) attributes {dimension_semantics = [#tpu.dimension_semantics<parallel>, #tpu.dimension_semantics<parallel>], iteration_bounds = array<i64: 1, 1>, scalar_prefetch = 0 : i64, scratch_operands = 0 : i64, tpu.core_type = #tpu.core_type<tc>, window_params = [{transform_indices = @transform_0, window_bounds = array<i64: 16, 32>}, {transform_indices = @transform_1, window_bounds = array<i64: 32, 128>}, {transform_indices = @transform_2, window_bounds = array<i64: 1, 128>}, {transform_indices = @transform_3, window_bounds = array<i64: 16, 128>}]} {
    %c0 = arith.constant 0 : index
    %c0_0 = arith.constant 0 : index
    %0 = vector.load %arg2[%c0, %c0_0] : memref<16x32xf32, #tpu.memory_space<vmem>>, vector<16x32xf32>
    %1 = arith.truncf %0 : vector<16x32xf32> to vector<16x32xbf16>
    %c0_1 = arith.constant 0 : index
    %c0_2 = arith.constant 0 : index
    %2 = vector.load %arg3[%c0_1, %c0_2] : memref<32x128xf32, #tpu.memory_space<vmem>>, vector<32x128xf32>
    %3 = arith.truncf %2 : vector<32x128xf32> to vector<32x128xbf16>
    %cst = arith.constant dense<0.000000e+00> : vector<16x128xf32>
    %4 = tpu.matmul %1, %3, %cst {dimension_numbers = #tpu.dot_dimension_numbers<[1], [0], [0], [1], [0, 0, 1, 1], [], []>} : vector<16x32xbf16>, vector<32x128xbf16>, vector<16x128xf32> -> vector<16x128xf32>
    %c0_3 = arith.constant 0 : index
    %c0_4 = arith.constant 0 : index
    %5 = vector.load %arg4[%c0_3, %c0_4] : memref<1x128xf32, #tpu.memory_space<vmem>>, vector<1x128xf32>
    %6 = vector.broadcast %5 : vector<1x128xf32> to vector<16x128xf32>
    %7 = arith.addf %4, %6 : vector<16x128xf32>
    %cst_5 = arith.constant 5.000000e-01 : f32
    %8 = vector.broadcast %cst_5 : f32 to vector<16x128xf32>
    %9 = arith.mulf %7, %8 : vector<16x128xf32>
    %cst_6 = arith.constant 0.707106769 : f32
    %10 = vector.broadcast %cst_6 : f32 to vector<16x128xf32>
    %11 = arith.mulf %7, %10 : vector<16x128xf32>
    %12 = math.erf %11 : vector<16x128xf32>
    %cst_7 = arith.constant 1.000000e+00 : f32
    %13 = vector.broadcast %cst_7 : f32 to vector<16x128xf32>
    %14 = arith.addf %13, %12 : vector<16x128xf32>
    %15 = arith.mulf %9, %14 : vector<16x128xf32>
    %c0_8 = arith.constant 0 : index
    %c0_9 = arith.constant 0 : index
    %16 = vector.load %arg5[%c0_8, %c0_9] : memref<16x128xf32, #tpu.memory_space<vmem>>, vector<16x128xf32>
    tpu.vector_store %arg5[%c0_8, %c0_9], %15 {strides = array<i32>} : memref<16x128xf32, #tpu.memory_space<vmem>>, vector<16x128xf32>,
    return
  }
  func.func @transform_0(%arg0: i32, %arg1: i32) -> (i32, i32) {
    %c0_i32 = arith.constant 0 : i32
    %c0_i32_0 = arith.constant 0 : i32
    return %arg0, %c0_i32 : i32, i32
  }
  func.func @transform_1(%arg0: i32, %arg1: i32) -> (i32, i32) {
    %c0_i32 = arith.constant 0 : i32
    %c0_i32_0 = arith.constant 0 : i32
    return %c0_i32, %arg1 : i32, i32
  }
  func.func @transform_2(%arg0: i32, %arg1: i32) -> (i32, i32) {
    %c0_i32 = arith.constant 0 : i32
    %c0_i32_0 = arith.constant 0 : i32
    return %c0_i32, %arg1 : i32, i32
  }
  func.func @transform_3(%arg0: i32, %arg1: i32) -> (i32, i32) {
    %c0_i32 = arith.constant 0 : i32
    return %arg0, %arg1 : i32, i32
  }
}

</mosaic_0001>

<llo_original>
// kernel: tpu_custom_call.1
$region0: #{tpu_custom_call.1}
  #allocation0 [shape = 'u32[]', space=smem, size = 0x4, offset = 0x4, fixed_abs, tag = 'smem constant byte address 0x4 - core index']
  #allocation1 [shape = 'u32[144,128]{1,0:T(1,128)}', space=vmem, size = 0x12000, scoped, tag = 'internal scratch']
  %s0 = inlined_call_operand.hbm [shape: f32[16,32], index: 0, kind: input, shape index: {}]
  %s1 = inlined_call_operand.hbm [shape: f32[32,128], index: 1, kind: input, shape index: {}]
  %s2 = inlined_call_operand.vmem [shape: f32[1,128], index: 2, kind: input, shape index: {}]
  %s3 = inlined_call_operand.hbm [shape: f32[16,128], index: 3, kind: output, shape index: {}]
  %s4 = sld [smem:[#allocation0]]
  $region30: #{tpu_custom_call.1} parent=0
    _
  %s6 = ssub.s32 1, %s4
  %s7 = scalar_select 0, %s6, %s4
  $region1: #{tpu_custom_call.1} parent=0
    #allocation2 [shape = 'u8[8192]{0}', space=vmem, size = 0x2000, scoped, tag = 'input window, operand 0, single buffered']
    #allocation3 [shape = 's32[1]{0}', space=sflag, size = 0x4, scoped, tag = 'scoped memory for tpu_custom_call.1']
    #allocation4 [shape = 's32[1]{0}', space=sflag, size = 0x4, scoped, tag = 'scoped memory for tpu_custom_call.1']
    #allocation5 [shape = 'u8[16384]{0}', space=vmem, size = 0x4000, scoped, tag = 'input window, operand 1, single buffered']
    #allocation6 [shape = 's32[1]{0}', space=sflag, size = 0x4, scoped, tag = 'scoped memory for tpu_custom_call.1']
    #allocation7 [shape = 'u8[8192]{0}', space=vmem, size = 0x2000, scoped, tag = 'output window, operand 0, single buffered']
    %8 = vsyncpa [#allocation3], 0
    %9 = vsyncpa [#allocation6], 0
    %10 = vsyncpa [#allocation4], 0
    // Predicated region
    $region2: #{tpu_custom_call.1} parent=1 // pred_check
      _
    $region3: #{tpu_custom_call.1} parent=1 // pred_check_branch
      %12 = sbr.rel (0) target = $region5
    $region4: #{tpu_custom_call.1} parent=1 // pred_region
      %s14 = ssub.s32 256, 256
      %15 = vsyncadd [#allocation3], %s14
      %s16 = sshll.u32 [#allocation2], 4
      %s17 = int_to_ptr.vmem [resolvable:$true] %s16
      %22 = dma.hbm_to_vmem [thread:$0]  %s0, 256, %s17, [#allocation3], 128, 128, 8
    $region5: #{tpu_custom_call.1} parent=1 // pred_fallthru
      _
    // Predicated region
    $region6: #{tpu_custom_call.1} parent=1 // pred_check
      _
    $region7: #{tpu_custom_call.1} parent=1 // pred_check_branch
      %24 = sbr.rel (0) target = $region9
    $region8: #{tpu_custom_call.1} parent=1 // pred_region
      %s26 = ssub.s32 512, 512
      %27 = vsyncadd [#allocation6], %s26
      %s28 = sshll.u32 [#allocation5], 4
      %s29 = int_to_ptr.vmem [resolvable:$true] %s28
      %34 = dma.hbm_to_vmem [thread:$0]  %s1, 512, %s29, [#allocation6], 128, 128, 8
    $region9: #{tpu_custom_call.1} parent=1 // pred_fallthru
      _
    // Predicated region
    $region10: #{tpu_custom_call.1} parent=1 // pred_check
      _
    $region11: #{tpu_custom_call.1} parent=1 // pred_check_branch
      %36 = sbr.rel (0) target = $region13
    $region12: #{tpu_custom_call.1} parent=1 // pred_region
      _
    $region13: #{tpu_custom_call.1} parent=1 // pred_fallthru
      _
    // Predicated region
    $region14: #{tpu_custom_call.1} parent=1 // pred_check
      _
    $region15: #{tpu_custom_call.1} parent=1 // pred_check_branch
      %38 = sbr.rel (0) target = $region17
    $region16: #{tpu_custom_call.1} parent=1 // pred_region
      %39 = dma.done [#allocation3], 256
    $region17: #{tpu_custom_call.1} parent=1 // pred_fallthru
      _
    // Predicated region
    $region18: #{tpu_custom_call.1} parent=1 // pred_check
      _
    $region19: #{tpu_custom_call.1} parent=1 // pred_check_branch
      %41 = sbr.rel (0) target = $region21
    $region20: #{tpu_custom_call.1} parent=1 // pred_region
      %42 = dma.done [#allocation6], 512
    $region21: #{tpu_custom_call.1} parent=1 // pred_fallthru
      _
    %v44 = vld [vmem:[#allocation2] sm:$0xff]
    %v45 = vld [vmem:[#allocation2 + $0x8] sm:$0xff]
    %v46 = vpack.c.bf16 %v45, %v44
    %v47 = vld [vmem:[#allocation5] sm:$0xff]
    %v48 = vld [vmem:[#allocation5 + $0x8] sm:$0xff]
    %v49 = vld [vmem:[#allocation5 + $0x10] sm:$0xff]
    %v50 = vld [vmem:[#allocation5 + $0x18] sm:$0xff]
    %v51 = vpack.c.bf16 %v48, %v47
    %v52 = vpack.c.bf16 %v50, %v49
    %v53 = vld [vmem:[%s2] sm:$0x1]
    %v55 = vlaneseq
    %v56 = vshrl.u32 %v55, 7
    %v57 = vsub.s32 0, %v56
    %v58 = vrot.slane %v53, %v57
    %vm60 = vcmask 261120
    %v62 = vsel %vm60, %v46, 0
    %64 = vmatprep.subr.bf16.mxu0 0
    %65 = vmatpush1.bf16.msra.mxu0 0
    %66 = vmatprep.subr.bf16.mxu0 0
    %67 = vmatpush1.bf16.msra.mxu0 0
    %68 = vmatprep.subr.bf16.mxu0 0
    %69 = vmatpush1.bf16.msra.mxu0 0
    %70 = vmatprep.subr.bf16.mxu0 0
    %71 = vmatpush1.bf16.msra.mxu0 0
    %72 = vmatprep.subr.bf16.mxu0 0
    %73 = vmatpush1.bf16.msra.mxu0 0
    %74 = vmatprep.subr.bf16.mxu0 0
    %75 = vmatpush1.bf16.msra.mxu0 0
    %76 = vmatprep.subr.bf16.mxu0 0
    %77 = vmatpush1.bf16.msra.mxu0 %v52
    %78 = vmatprep.subr.bf16.mxu0 0
    %79 = vmatpush1.bf16.msra.mxu0 %v51
    %80 = vmatprep.subr.bf16.mxu0 0
    %81 = vmatpush2.bf16.msra.mxu0 0
    %82 = vmatprep.subr.bf16.mxu0 0
    %83 = vmatpush2.bf16.msra.mxu0 0
    %84 = vmatprep.subr.bf16.mxu0 0
    %85 = vmatpush2.bf16.msra.mxu0 0
    %86 = vmatprep.subr.bf16.mxu0 0
    %87 = vmatpush2.bf16.msra.mxu0 0
    %88 = vmatprep.subr.bf16.mxu0 0
    %89 = vmatpush2.bf16.msra.mxu0 0
    %90 = vmatprep.subr.bf16.mxu0 0
    %91 = vmatpush2.bf16.msra.mxu0 0
    %92 = vmatprep.subr.bf16.mxu0 0
    %93 = vmatpush2.bf16.msra.mxu0 0
    %94 = vmatprep.subr.bf16.mxu0 0
    %95 = vmatpush2.bf16.msra.mxu0 0
    %96 = vmatprep.mubr.bf16.mxu0 0
    %97 = vmatmul.mubr.bf16.gmra.mxu0 %v62
    %v98 = vpop.f32.mrf.mxu0
    %v99 = vadd.f32 %v58, %v98
    %v100 = vpop.f32.mrf.mxu0
    %v101 = vpop.f32.mrf.mxu0
    %v102 = vadd.f32 %v58, %v101
    %v103 = vpop.f32.mrf.mxu0
    %104 = vdwg.mxu0
    %v105 = vmul.f32 %v99, 0.5
    %v106 = vmul.f32 %v102, 0.5
    %v107 = vmul.f32 %v99, 0.70710677
    %v108 = vmul.f32 %v102, 0.70710677
    %v109 = verf.f32.pop %v107
    %v110 = verf.f32.pop %v108
    %v111 = vadd.f32 %v109, 1.0
    %v112 = vadd.f32 %v110, 1.0
    %v113 = vmul.f32 %v105, %v111
    %v114 = vmul.f32 %v106, %v112
    %115 = vst [vmem:[#allocation7] sm:$0xff] %v113
    %116 = vst [vmem:[#allocation7 + $0x8] sm:$0xff] %v114
    // Predicated region
    $region22: #{tpu_custom_call.1} parent=1 // pred_check
      _
    $region23: #{tpu_custom_call.1} parent=1 // pred_check_branch
      %118 = sbr.rel (0) target = $region25
    $region24: #{tpu_custom_call.1} parent=1 // pred_region
      %s120 = ssub.s32 256, 256
      %121 = vsyncadd [#allocation4], %s120
      %s122 = sshll.u32 [#allocation7], 4
      %s123 = int_to_ptr.vmem [resolvable:$true] %s122
      %128 = dma.vmem_to_hbm [thread:$0]  %s123, 256, %s3, [#allocation4], 128, 128, 8
    $region25: #{tpu_custom_call.1} parent=1 // pred_fallthru
      _
    // Predicated region
    $region26: #{tpu_custom_call.1} parent=1 // pred_check
      _
    $region27: #{tpu_custom_call.1} parent=1 // pred_check_branch
      %130 = sbr.rel (0) target = $region29
    $region28: #{tpu_custom_call.1} parent=1 // pred_region
      %131 = dma.done [#allocation4], 256
    $region29: #{tpu_custom_call.1} parent=1 // pred_fallthru
      _
    %132 = vsyncpa [#allocation3], 1
    %133 = vsyncpa [#allocation6], 1
    %134 = vsyncpa [#allocation4], 1

</llo_original>
